<compile_context>
chip_gen: v6e
topology: v6e:2x2x1
jax: 0.10.0
libtpu: 0.0.40
codegen_flags: <defaults>
</compile_context>

<pallas_src>
import functools

import jax
import jax.numpy as jnp
from jax.experimental import pallas as pl
from jax.experimental.pallas import tpu as pltpu


# ---------------------------------------------------------------------------
# kernels
# ---------------------------------------------------------------------------
def _softmax_rows(s):
    m = jnp.max(s, axis=-1, keepdims=True)
    e = jnp.exp(s - m)
    l = jnp.sum(e, axis=-1, keepdims=True)
    # EUP approx reciprocal (free slot) + one Newton step on the tiny (bt, tq, 1)
    # normalizer: avoids a full (bt, tq, Lk) VALU divide at ~f32 accuracy.
    inv_l = pl.reciprocal(l, approx=True)
    inv_l = inv_l * (2.0 - l * inv_l)
    return e * inv_l


def _sdpa_kernel(q_ref, k_ref, v_ref, o_ref, attn_ref, *, inv_temp):
    # blocks: q (bt, tq, Dk)   k (bt, Lk, Dk)   v (bt, Lk, Dv)
    q = q_ref[...] * inv_temp                      # scale tq*Dk elems, not tq*Lk
    k = k_ref[...]
    v = v_ref[...]
    s = jnp.einsum("bqd,bkd->bqk", q, k, preferred_element_type=jnp.float32)
    p = _softmax_rows(s)
    # TODO(synk): attention dropout omitted (eval-mode identity); training mode would
    # need pltpu.prng_seed / pltpu.prng_random_bits masking here.
    p_lo = p.astype(attn_ref.dtype)                # single cast, reused below
    attn_ref[...] = p_lo
    o_ref[...] = jnp.einsum("bqk,bkd->bqd", p_lo.astype(v.dtype), v,
                            preferred_element_type=jnp.float32).astype(o_ref.dtype)


def _sdpa_mask_kernel(q_ref, k_ref, v_ref, m_ref, o_ref, attn_ref, *, inv_temp):
    q = q_ref[...] * inv_temp
    k = k_ref[...]
    v = v_ref[...]
    s = jnp.einsum("bqd,bkd->bqk", q, k, preferred_element_type=jnp.float32)
    # masked_fill(mask, -inf). Fully-masked rows produce NaN, exactly like the
    # reference torch module (softmax over an all -inf row).
    s = jnp.where(m_ref[...] != 0, -jnp.inf, s)
    p = _softmax_rows(s)
    p_lo = p.astype(attn_ref.dtype)
    attn_ref[...] = p_lo
    o_ref[...] = jnp.einsum("bqk,bkd->bqd", p_lo.astype(v.dtype), v,
                            preferred_element_type=jnp.float32).astype(o_ref.dtype)


# ---------------------------------------------------------------------------
# chip-aware VMEM budget & tile selection
# ---------------------------------------------------------------------------
def _vmem_limits():
    """Returns (vmem_limit_bytes for the compiler, planning budget for tiles)."""
    phys = 64 * 1024 * 1024
    try:
        info = pltpu.get_tpu_info()
        phys = int(getattr(info, "vmem_capacity_bytes", phys))
    except Exception:
        pass
    if phys <= 64 * 1024 * 1024:          # v7x-class: 64 MiB per TensorCore
        limit = 48 * 1024 * 1024
    else:                                 # v5e / v6e: 128 MiB
        limit = 100 * 1024 * 1024
    budget = int(limit * 0.75)            # headroom for compiler-internal scratch
    return limit, budget


def _pick_tiles(B, Lq, Lk, Dk, Dv, q_dtype, attn_dtype, has_mask, budget):
    """Pick (bt, tq): batch tile and q-row tile that fit the VMEM budget."""
    sub = 16 if jnp.dtype(q_dtype) == jnp.dtype(jnp.bfloat16) else 8
    isz = jnp.dtype(q_dtype).itemsize
    asz = jnp.dtype(attn_dtype).itemsize

    def usage(bt, tq):
        qkv = 2 * bt * (tq * Dk + Lk * Dk + Lk * Dv) * isz     # double-buffered ins
        outs = 2 * bt * tq * (Dv * isz + Lk * asz)              # double-buffered outs
        mask_b = (2 * bt * tq * Lk) if has_mask else 0          # int8 mask
        temps = 3 * bt * tq * Lk * 4                            # f32 s / e / p
        return qkv + outs + mask_b + temps

    # q-row tile: largest sublane-aligned divisor of Lq that fits the budget.
    tq_cands = [t for t in (1024, 512, 256, 128, 64, 32, 16, 8)
                if t <= Lq and Lq % t == 0 and t % sub == 0]
    if not tq_cands:
        tq_cands = [Lq]                      # tiny / ragged Lq: full-extent block
    tq = next((t for t in tq_cands if usage(1, t) <= budget), tq_cands[-1])

    # Batch tile: amortize per-grid-step overhead when the per-step work is small,
    # but keep >=2 grid steps on non-tiny problems (dual-TC sharding on v7x).
    bt = 1
    for cand in range(2, B + 1):
        if B % cand:
            continue
        if usage(cand, tq) > budget or cand * tq * Lk > 512 * 1024:
            continue
        if (B // cand) * (Lq // tq) < 2 and B * Lq * Lk >= 256 * 1024:
            continue
        bt = cand
    return bt, tq


# ---------------------------------------------------------------------------
# wrapper
# ---------------------------------------------------------------------------
def scaled_dot_product_attention(q, k, v, temperature, mask=None):
    """q: (B, Lq, Dk); k: (B, Lk, Dk); v: (B, Lk, Dv); mask: optional (B, Lq, Lk)
    where nonzero/True means "masked out". Returns (output, attn) like the torch
    module in eval mode (attn returned in q.dtype)."""
    B, Lq, Dk = q.shape
    Bk, Lk, Dk2 = k.shape
    Bv, Lv, Dv = v.shape
    assert B == Bk == Bv and Dk == Dk2 and Lk == Lv

    attn_dtype = q.dtype
    vmem_limit, budget = _vmem_limits()
    bt, tq = _pick_tiles(B, Lq, Lk, Dk, Dv, q.dtype, attn_dtype,
                         mask is not None, budget)
    assert B % bt == 0 and Lq % tq == 0

    inv_temp = 1.0 / float(temperature)
    grid = (B // bt, Lq // tq)

    q_spec = pl.BlockSpec((bt, tq, Dk), lambda b, i: (b, i, 0))
    k_spec = pl.BlockSpec((bt, Lk, Dk), lambda b, i: (b, 0, 0))  # resident across q tiles
    v_spec = pl.BlockSpec((bt, Lk, Dv), lambda b, i: (b, 0, 0))
    o_spec = pl.BlockSpec((bt, tq, Dv), lambda b, i: (b, i, 0))
    a_spec = pl.BlockSpec((bt, tq, Lk), lambda b, i: (b, i, 0))

    out_shapes = (jax.ShapeDtypeStruct((B, Lq, Dv), q.dtype),
                  jax.ShapeDtypeStruct((B, Lq, Lk), attn_dtype))

    compiler_params = pltpu.CompilerParams(
        dimension_semantics=("parallel", "parallel"),
        vmem_limit_bytes=vmem_limit,
    )

    if mask is None:
        kernel = functools.partial(_sdpa_kernel, inv_temp=inv_temp)
        out, attn = pl.pallas_call(
            kernel,
            out_shape=out_shapes,
            grid_spec=pltpu.PrefetchScalarGridSpec(
                num_scalar_prefetch=0,
                grid=grid,
                in_specs=[q_spec, k_spec, v_spec],
                out_specs=[o_spec, a_spec],
            ),
            compiler_params=compiler_params,
        )(q, k, v)
    else:
        mask_i8 = mask.astype(jnp.int8)   # 4x less HBM read traffic than int32
        m_spec = pl.BlockSpec((bt, tq, Lk), lambda b, i: (b, i, 0))
        kernel = functools.partial(_sdpa_mask_kernel, inv_temp=inv_temp)
        out, attn = pl.pallas_call(
            kernel,
            out_shape=out_shapes,
            grid_spec=pltpu.PrefetchScalarGridSpec(
                num_scalar_prefetch=0,
                grid=grid,
                in_specs=[q_spec, k_spec, v_spec, m_spec],
                out_specs=[o_spec, a_spec],
            ),
            compiler_params=compiler_params,
        )(q, k, v, mask_i8)

    return out, attn


# ---------------------------------------------------------------------------
# pure-JAX reference (matches the PyTorch forward in eval mode)
# ---------------------------------------------------------------------------
def _reference(q, k, v, temperature, mask=None):
    attn = jnp.einsum("bqd,bkd->bqk", q, k) / temperature
    if mask is not None:
        attn = jnp.where(mask, -jnp.inf, attn)
    attn = jax.nn.softmax(attn, axis=-1)
    out = jnp.einsum("bqk,bkd->bqd", attn, v)
    return out, attn


if __name__ == "__main__":
    key = jax.random.PRNGKey(0)
    B, Lq, Lk, D = 2, 8, 8, 32            # batch, query len, key len, head dim

    kq, kk, kv = jax.random.split(key, 3)
    q = jax.random.normal(kq, (B, Lq, D), dtype=jnp.float32)
    k = jax.random.normal(kk, (B, Lk, D), dtype=jnp.float32)
    v = jax.random.normal(kv, (B, Lk, D), dtype=jnp.float32)
    temperature = float(D) ** 0.5          # the model uses sqrt(d_k)

    # --- mask=None path (the common call in the original model) ---
    out, attn = scaled_dot_product_attention(q, k, v, temperature)
    out, attn = jax.block_until_ready((out, attn))
    ref_out, ref_attn = _reference(q, k, v, temperature)
    assert out.shape == (B, Lq, D) and attn.shape == (B, Lq, Lk)
    assert jnp.allclose(out, ref_out, atol=1e-3, rtol=1e-3), "output mismatch (no mask)"
    assert jnp.allclose(attn, ref_attn, atol=1e-3, rtol=1e-3), "attn mismatch (no mask)"

    # --- masked path (causal-style; True = masked, every row keeps >=1 key) ---
    mask = jnp.broadcast_to(jnp.arange(Lk)[None, :] > jnp.arange(Lq)[:, None],
                            (B, Lq, Lk))
    out_m, attn_m = scaled_dot_product_attention(q, k, v, temperature, mask=mask)
    out_m, attn_m = jax.block_until_ready((out_m, attn_m))
    ref_out_m, ref_attn_m = _reference(q, k, v, temperature, mask)
    assert jnp.allclose(out_m, ref_out_m, atol=1e-3, rtol=1e-3), "output mismatch (mask)"
    assert jnp.allclose(attn_m, ref_attn_m, atol=1e-3, rtol=1e-3), "attn mismatch (mask)"

    print("KERNEL_OK")
</pallas_src>

<mosaic_0001>
module attributes {stable_mosaic.version = 11 : i64} {
  func.func @_sdpa_kernel(%arg0: i32, %arg1: i32, %arg2: memref<2x8x32xf32, #tpu.memory_space<vmem>>, %arg3: memref<2x8x32xf32, #tpu.memory_space<vmem>>, %arg4: memref<2x8x32xf32, #tpu.memory_space<vmem>>, %arg5: memref<2x8x32xf32, #tpu.memory_space<vmem>>, %arg6: memref<2x8x8xf32, #tpu.memory_space<vmem>>) attributes {dimension_semantics = [#tpu.dimension_semantics<parallel>, #tpu.dimension_semantics<parallel>], iteration_bounds = array<i64: 1, 1>, scalar_prefetch = 0 : i64, scratch_operands = 0 : i64, tpu.core_type = #tpu.core_type<tc>, window_params = [{transform_indices = @transform_0, window_bounds = array<i64: 2, 8, 32>}, {transform_indices = @transform_1, window_bounds = array<i64: 2, 8, 32>}, {transform_indices = @transform_2, window_bounds = array<i64: 2, 8, 32>}, {transform_indices = @transform_3, window_bounds = array<i64: 2, 8, 32>}, {transform_indices = @transform_4, window_bounds = array<i64: 2, 8, 8>}]} {
    %c0 = arith.constant 0 : index
    %c0_0 = arith.constant 0 : index
    %c0_1 = arith.constant 0 : index
    %0 = vector.load %arg2[%c0, %c0_0, %c0_1] : memref<2x8x32xf32, #tpu.memory_space<vmem>>, vector<2x8x32xf32>
    %cst = arith.constant 0.176776692 : f32
    %1 = vector.broadcast %cst : f32 to vector<2x8x32xf32>
    %2 = arith.mulf %0, %1 : vector<2x8x32xf32>
    %c0_2 = arith.constant 0 : index
    %c0_3 = arith.constant 0 : index
    %c0_4 = arith.constant 0 : index
    %3 = vector.load %arg3[%c0_2, %c0_3, %c0_4] : memref<2x8x32xf32, #tpu.memory_space<vmem>>, vector<2x8x32xf32>
    %c0_5 = arith.constant 0 : index
    %c0_6 = arith.constant 0 : index
    %c0_7 = arith.constant 0 : index
    %4 = vector.load %arg4[%c0_5, %c0_6, %c0_7] : memref<2x8x32xf32, #tpu.memory_space<vmem>>, vector<2x8x32xf32>
    "tpu.trace_start"() <{level = 10 : i32, message = "bqd,bkd->bqk"}> : () -> ()
    %cst_8 = arith.constant dense<0.000000e+00> : vector<2x8x8xf32>
    %5 = tpu.matmul %2, %3, %cst_8 {dimension_numbers = #tpu.dot_dimension_numbers<[2], [2], [1], [1], [0, 0, 0, 1, 1, 1], [0], [0]>} : vector<2x8x32xf32>, vector<2x8x32xf32>, vector<2x8x8xf32> -> vector<2x8x8xf32>
    "tpu.trace_stop"() : () -> ()
    %cst_9 = arith.constant dense<0xFF800000> : vector<2x8xf32>
    %6 = vector.multi_reduction <maximumf>, %5, %cst_9 [2] : vector<2x8x8xf32> to vector<2x8xf32>
    %7 = vector.shape_cast %6 : vector<2x8xf32> to vector<2x8x1xf32>
    %8 = vector.broadcast %7 : vector<2x8x1xf32> to vector<2x8x8xf32>
    %9 = arith.subf %5, %8 : vector<2x8x8xf32>
    %10 = math.exp %9 : vector<2x8x8xf32>
    %cst_10 = arith.constant dense<0.000000e+00> : vector<2x8xf32>
    %11 = vector.multi_reduction <add>, %10, %cst_10 [2] : vector<2x8x8xf32> to vector<2x8xf32>
    %12 = vector.shape_cast %11 : vector<2x8xf32> to vector<2x8x1xf32>
    %13 = tpu.reciprocal %12 {approx = true} : vector<2x8x1xf32> -> vector<2x8x1xf32>
    %14 = arith.mulf %12, %13 : vector<2x8x1xf32>
    %cst_11 = arith.constant 2.000000e+00 : f32
    %15 = vector.broadcast %cst_11 : f32 to vector<2x8x1xf32>
    %16 = arith.subf %15, %14 : vector<2x8x1xf32>
    %17 = arith.mulf %13, %16 : vector<2x8x1xf32>
    %18 = vector.broadcast %17 : vector<2x8x1xf32> to vector<2x8x8xf32>
    %19 = arith.mulf %10, %18 : vector<2x8x8xf32>
    %c0_12 = arith.constant 0 : index
    %c0_13 = arith.constant 0 : index
    %c0_14 = arith.constant 0 : index
    %20 = vector.load %arg6[%c0_12, %c0_13, %c0_14] : memref<2x8x8xf32, #tpu.memory_space<vmem>>, vector<2x8x8xf32>
    tpu.vector_store %arg6[%c0_12, %c0_13, %c0_14], %19 {strides = array<i32>} : memref<2x8x8xf32, #tpu.memory_space<vmem>>, vector<2x8x8xf32>,
    "tpu.trace_start"() <{level = 10 : i32, message = "bqk,bkd->bqd"}> : () -> ()
    %cst_15 = arith.constant dense<0.000000e+00> : vector<2x8x32xf32>
    %21 = tpu.matmul %19, %4, %cst_15 {dimension_numbers = #tpu.dot_dimension_numbers<[2], [1], [1], [2], [0, 0, 0, 1, 1, 2], [0], [0]>} : vector<2x8x8xf32>, vector<2x8x32xf32>, vector<2x8x32xf32> -> vector<2x8x32xf32>
    "tpu.trace_stop"() : () -> ()
    %c0_16 = arith.constant 0 : index
    %c0_17 = arith.constant 0 : index
    %c0_18 = arith.constant 0 : index
    %22 = vector.load %arg5[%c0_16, %c0_17, %c0_18] : memref<2x8x32xf32, #tpu.memory_space<vmem>>, vector<2x8x32xf32>
    tpu.vector_store %arg5[%c0_16, %c0_17, %c0_18], %21 {strides = array<i32>} : memref<2x8x32xf32, #tpu.memory_space<vmem>>, vector<2x8x32xf32>,
    return
  }
  func.func @transform_0(%arg0: i32, %arg1: i32) -> (i32, i32, i32) {
    %c0_i32 = arith.constant 0 : i32
    %c0_i32_0 = arith.constant 0 : i32
    return %arg0, %arg1, %c0_i32 : i32, i32, i32
  }
  func.func @transform_1(%arg0: i32, %arg1: i32) -> (i32, i32, i32) {
    %c0_i32 = arith.constant 0 : i32
    %c0_i32_0 = arith.constant 0 : i32
    %c0_i32_1 = arith.constant 0 : i32
    return %arg0, %c0_i32, %c0_i32_0 : i32, i32, i32
  }
  func.func @transform_2(%arg0: i32, %arg1: i32) -> (i32, i32, i32) {
    %c0_i32 = arith.constant 0 : i32
    %c0_i32_0 = arith.constant 0 : i32
    %c0_i32_1 = arith.constant 0 : i32
    return %arg0, %c0_i32, %c0_i32_0 : i32, i32, i32
  }
  func.func @transform_3(%arg0: i32, %arg1: i32) -> (i32, i32, i32) {
    %c0_i32 = arith.constant 0 : i32
    %c0_i32_0 = arith.constant 0 : i32
    return %arg0, %arg1, %c0_i32 : i32, i32, i32
  }
  func.func @transform_4(%arg0: i32, %arg1: i32) -> (i32, i32, i32) {
    %c0_i32 = arith.constant 0 : i32
    %c0_i32_0 = arith.constant 0 : i32
    return %arg0, %arg1, %c0_i32 : i32, i32, i32
  }
}

</mosaic_0001>

<llo_original>
// kernel: tpu_custom_call.1
$region0: #{tpu_custom_call.1}
  #allocation0 [shape = 'u32[]', space=smem, size = 0x4, offset = 0x4, fixed_abs, tag = 'smem constant byte address 0x4 - core index']
  #allocation1 [shape = 'u32[144,128]{1,0:T(1,128)}', space=vmem, size = 0x12000, scoped, tag = 'internal scratch']
  %s0 = inlined_call_operand.hbm [shape: f32[2,8,32], index: 0, kind: input, shape index: {}]
  %s1 = inlined_call_operand.hbm [shape: f32[2,8,32], index: 1, kind: input, shape index: {}]
  %s2 = inlined_call_operand.hbm [shape: f32[2,8,32], index: 2, kind: input, shape index: {}]
  %s3 = inlined_call_operand.hbm [shape: f32[2,8,32], index: 3, kind: output, shape index: {0}]
  %s4 = inlined_call_operand.hbm [shape: f32[2,8,8], index: 4, kind: output, shape index: {1}]
  %5 = xla_tuple %s3, %s4
  %s6 = sld [smem:[#allocation0]]
  $region42: #{tpu_custom_call.1} parent=0
    _
  %s8 = ssub.s32 1, %s6
  %s9 = scalar_select 0, %s8, %s6
  $region1: #{tpu_custom_call.1} parent=0
    #allocation2 [shape = 'u8[8192]{0}', space=vmem, size = 0x2000, scoped, tag = 'input window, operand 0, single buffered']
    #allocation3 [shape = 's32[1]{0}', space=sflag, size = 0x4, scoped, tag = 'scoped memory for tpu_custom_call.1']
    #allocation4 [shape = 's32[1]{0}', space=sflag, size = 0x4, scoped, tag = 'scoped memory for tpu_custom_call.1']
    #allocation5 [shape = 'u8[8192]{0}', space=vmem, size = 0x2000, scoped, tag = 'input window, operand 1, single buffered']
    #allocation6 [shape = 's32[1]{0}', space=sflag, size = 0x4, scoped, tag = 'scoped memory for tpu_custom_call.1']
    #allocation7 [shape = 'u8[8192]{0}', space=vmem, size = 0x2000, scoped, tag = 'input window, operand 2, single buffered']
    #allocation8 [shape = 'u8[8192]{0}', space=vmem, size = 0x2000, scoped, tag = 'output window, operand 0, single buffered']
    #allocation9 [shape = 'u8[8192]{0}', space=vmem, size = 0x2000, scoped, tag = 'output window, operand 1, single buffered']
    #allocation10 [shape = 's32[1]{0}', space=sflag, size = 0x4, scoped, tag = 'scoped memory for tpu_custom_call.1']
    %10 = vsyncpa [#allocation3], 0
    %11 = vsyncpa [#allocation6], 0
    %12 = vsyncpa [#allocation4], 0
    %13 = vsyncpa [#allocation10], 0
    // Predicated region
    $region2: #{tpu_custom_call.1} parent=1 // pred_check
      _
    $region3: #{tpu_custom_call.1} parent=1 // pred_check_branch
      %15 = sbr.rel (0) target = $region5
    $region4: #{tpu_custom_call.1} parent=1 // pred_region
      %s17 = ssub.s32 256, 256
      %18 = vsyncadd [#allocation3], %s17
      %s19 = sshll.u32 [#allocation2], 4
      %s20 = int_to_ptr.vmem [resolvable:$true] %s19
      %25 = dma.hbm_to_vmem [thread:$0]  %s0, 256, %s20, [#allocation3], 128, 128, 8
    $region5: #{tpu_custom_call.1} parent=1 // pred_fallthru
      _
    // Predicated region
    $region6: #{tpu_custom_call.1} parent=1 // pred_check
      _
    $region7: #{tpu_custom_call.1} parent=1 // pred_check_branch
      %27 = sbr.rel (0) target = $region9
    $region8: #{tpu_custom_call.1} parent=1 // pred_region
      %s29 = ssub.s32 256, 256
      %30 = vsyncadd [#allocation6], %s29
      %s31 = sshll.u32 [#allocation5], 4
      %s32 = int_to_ptr.vmem [resolvable:$true] %s31
      %37 = dma.hbm_to_vmem [thread:$0]  %s1, 256, %s32, [#allocation6], 128, 128, 8
    $region9: #{tpu_custom_call.1} parent=1 // pred_fallthru
      _
    // Predicated region
    $region10: #{tpu_custom_call.1} parent=1 // pred_check
      _
    $region11: #{tpu_custom_call.1} parent=1 // pred_check_branch
      %39 = sbr.rel (0) target = $region13
    $region12: #{tpu_custom_call.1} parent=1 // pred_region
      %s41 = ssub.s32 256, 256
      %42 = vsyncadd [#allocation6], %s41
      %s43 = sshll.u32 [#allocation7], 4
      %s44 = int_to_ptr.vmem [resolvable:$true] %s43
      %49 = dma.hbm_to_vmem [thread:$0]  %s2, 256, %s44, [#allocation6], 128, 128, 8
    $region13: #{tpu_custom_call.1} parent=1 // pred_fallthru
      _
    // Predicated region
    $region14: #{tpu_custom_call.1} parent=1 // pred_check
      _
    $region15: #{tpu_custom_call.1} parent=1 // pred_check_branch
      %51 = sbr.rel (0) target = $region17
    $region16: #{tpu_custom_call.1} parent=1 // pred_region
      %52 = dma.done [#allocation3], 256
    $region17: #{tpu_custom_call.1} parent=1 // pred_fallthru
      _
    // Predicated region
    $region18: #{tpu_custom_call.1} parent=1 // pred_check
      _
    $region19: #{tpu_custom_call.1} parent=1 // pred_check_branch
      %54 = sbr.rel (0) target = $region21
    $region20: #{tpu_custom_call.1} parent=1 // pred_region
      %55 = dma.done [#allocation6], 256
    $region21: #{tpu_custom_call.1} parent=1 // pred_fallthru
      _
    // Predicated region
    $region22: #{tpu_custom_call.1} parent=1 // pred_check
      _
    $region23: #{tpu_custom_call.1} parent=1 // pred_check_branch
      %57 = sbr.rel (0) target = $region25
    $region24: #{tpu_custom_call.1} parent=1 // pred_region
      %58 = dma.done [#allocation6], 256
    $region25: #{tpu_custom_call.1} parent=1 // pred_fallthru
      _
    %v59 = vld [vmem:[#allocation2] sm:$0xff]
    %v60 = vld [vmem:[#allocation2 + $0x8] sm:$0xff]
    %v61 = vmul.f32 %v59, 0.17677669
    %v62 = vmul.f32 %v60, 0.17677669
    %v63 = vld [vmem:[#allocation5] sm:$0xff]
    %v64 = vld [vmem:[#allocation5 + $0x8] sm:$0xff]
    %v65 = vld [vmem:[#allocation7] sm:$0xff]
    %v66 = vld [vmem:[#allocation7 + $0x8] sm:$0xff]
    %vm67 = vcmask 261120
    %v69 = vsel %vm67, %v61, 0
    %v72 = vsel %vm67, %v63, 0
    %74 = vmatprep.subr.mxu0 0.0
    %75 = vmatpush1.xpose.msra.mxu0 0.0
    %76 = vmatprep.subr.mxu0 0.0
    %77 = vmatpush1.xpose.msra.mxu0 0.0
    %78 = vmatprep.subr.mxu0 0.0
    %79 = vmatpush1.xpose.msra.mxu0 0.0
    %80 = vmatprep.subr.mxu0 0.0
    %81 = vmatpush1.xpose.msra.mxu0 0.0
    %82 = vmatprep.subr.mxu0 0.0
    %83 = vmatpush1.xpose.msra.mxu0 0.0
    %84 = vmatprep.subr.mxu0 0.0
    %85 = vmatpush1.xpose.msra.mxu0 0.0
    %86 = vmatprep.subr.mxu0 0.0
    %87 = vmatpush1.xpose.msra.mxu0 0.0
    %88 = vmatprep.subr.mxu0 0.0
    %89 = vmatpush1.xpose.msra.mxu0 0.0
    %90 = vmatprep.subr.mxu0 0.0
    %91 = vmatpush1.xpose.msra.mxu0 0.0
    %92 = vmatprep.subr.mxu0 0.0
    %93 = vmatpush1.xpose.msra.mxu0 0.0
    %94 = vmatprep.subr.mxu0 0.0
    %95 = vmatpush1.xpose.msra.mxu0 0.0
    %96 = vmatprep.subr.mxu0 0.0
    %97 = vmatpush1.xpose.msra.mxu0 0.0
    %98 = vmatprep.subr.mxu0 0.0
    %99 = vmatpush1.xpose.msra.mxu0 0.0
    %100 = vmatprep.subr.mxu0 0.0
    %101 = vmatpush1.xpose.msra.mxu0 0.0
    %102 = vmatprep.subr.mxu0 0.0
    %103 = vmatpush1.xpose.msra.mxu0 0.0
    %104 = vmatprep.subr.mxu0 0.0
    %105 = vmatpush1.xpose.msra.mxu0 %v72
    %106 = vmatprep.subr.mxu0 0.0
    %107 = vmatpush2.xpose.msra.mxu0 0.0
    %108 = vmatprep.subr.mxu0 0.0
    %109 = vmatpush2.xpose.msra.mxu0 0.0
    %110 = vmatprep.subr.mxu0 0.0
    %111 = vmatpush2.xpose.msra.mxu0 0.0
    %112 = vmatprep.subr.mxu0 0.0
    %113 = vmatpush2.xpose.msra.mxu0 0.0
    %114 = vmatprep.subr.mxu0 0.0
    %115 = vmatpush2.xpose.msra.mxu0 0.0
    %116 = vmatprep.subr.mxu0 0.0
    %117 = vmatpush2.xpose.msra.mxu0 0.0
    %118 = vmatprep.subr.mxu0 0.0
    %119 = vmatpush2.xpose.msra.mxu0 0.0
    %120 = vmatprep.subr.mxu0 0.0
    %121 = vmatpush2.xpose.msra.mxu0 0.0
    %122 = vmatprep.subr.mxu0 0.0
    %123 = vmatpush2.xpose.msra.mxu0 0.0
    %124 = vmatprep.subr.mxu0 0.0
    %125 = vmatpush2.xpose.msra.mxu0 0.0
    %126 = vmatprep.subr.mxu0 0.0
    %127 = vmatpush2.xpose.msra.mxu0 0.0
    %128 = vmatprep.subr.mxu0 0.0
    %129 = vmatpush2.xpose.msra.mxu0 0.0
    %130 = vmatprep.subr.mxu0 0.0
    %131 = vmatpush2.xpose.msra.mxu0 0.0
    %132 = vmatprep.subr.mxu0 0.0
    %133 = vmatpush2.xpose.msra.mxu0 0.0
    %134 = vmatprep.subr.mxu0 0.0
    %135 = vmatpush2.xpose.msra.mxu0 0.0
    %136 = vmatprep.subr.mxu0 0.0
    %137 = vmatpush2.xpose.msra.mxu0 0.0
    %138 = vmatprep.mubr.f32.mxu0 0.0
    %139 = vmatmul.mubr.f32.gmra.mxu0 %v69
    %v140 = vpop.f32.mrf.mxu0
    %v141 = vadd.f32 0.0, %v140
    %v142 = vpop.f32.mrf.mxu0
    %143 = vdwg.mxu0
    %v145 = vsel %vm67, %v62, 0
    %v148 = vsel %vm67, %v64, 0
    %150 = vmatprep.subr.mxu0 0.0
    %151 = vmatpush1.xpose.msra.mxu0 0.0
    %152 = vmatprep.subr.mxu0 0.0
    %153 = vmatpush1.xpose.msra.mxu0 0.0
    %154 = vmatprep.subr.mxu0 0.0
    %155 = vmatpush1.xpose.msra.mxu0 0.0
    %156 = vmatprep.subr.mxu0 0.0
    %157 = vmatpush1.xpose.msra.mxu0 0.0
    %158 = vmatprep.subr.mxu0 0.0
    %159 = vmatpush1.xpose.msra.mxu0 0.0
    %160 = vmatprep.subr.mxu0 0.0
    %161 = vmatpush1.xpose.msra.mxu0 0.0
    %162 = vmatprep.subr.mxu0 0.0
    %163 = vmatpush1.xpose.msra.mxu0 0.0
    %164 = vmatprep.subr.mxu0 0.0
    %165 = vmatpush1.xpose.msra.mxu0 0.0
    %166 = vmatprep.subr.mxu0 0.0
    %167 = vmatpush1.xpose.msra.mxu0 0.0
    %168 = vmatprep.subr.mxu0 0.0
    %169 = vmatpush1.xpose.msra.mxu0 0.0
    %170 = vmatprep.subr.mxu0 0.0
    %171 = vmatpush1.xpose.msra.mxu0 0.0
    %172 = vmatprep.subr.mxu0 0.0
    %173 = vmatpush1.xpose.msra.mxu0 0.0
    %174 = vmatprep.subr.mxu0 0.0
    %175 = vmatpush1.xpose.msra.mxu0 0.0
    %176 = vmatprep.subr.mxu0 0.0
    %177 = vmatpush1.xpose.msra.mxu0 0.0
    %178 = vmatprep.subr.mxu0 0.0
    %179 = vmatpush1.xpose.msra.mxu0 0.0
    %180 = vmatprep.subr.mxu0 0.0
    %181 = vmatpush1.xpose.msra.mxu0 %v148
    %182 = vmatprep.subr.mxu0 0.0
    %183 = vmatpush2.xpose.msra.mxu0 0.0
    %184 = vmatprep.subr.mxu0 0.0
    %185 = vmatpush2.xpose.msra.mxu0 0.0
    %186 = vmatprep.subr.mxu0 0.0
    %187 = vmatpush2.xpose.msra.mxu0 0.0
    %188 = vmatprep.subr.mxu0 0.0
    %189 = vmatpush2.xpose.msra.mxu0 0.0
    %190 = vmatprep.subr.mxu0 0.0
    %191 = vmatpush2.xpose.msra.mxu0 0.0
    %192 = vmatprep.subr.mxu0 0.0
    %193 = vmatpush2.xpose.msra.mxu0 0.0
    %194 = vmatprep.subr.mxu0 0.0
    %195 = vmatpush2.xpose.msra.mxu0 0.0
    %196 = vmatprep.subr.mxu0 0.0
    %197 = vmatpush2.xpose.msra.mxu0 0.0
    %198 = vmatprep.subr.mxu0 0.0
    %199 = vmatpush2.xpose.msra.mxu0 0.0
    %200 = vmatprep.subr.mxu0 0.0
    %201 = vmatpush2.xpose.msra.mxu0 0.0
    %202 = vmatprep.subr.mxu0 0.0
    %203 = vmatpush2.xpose.msra.mxu0 0.0
    %204 = vmatprep.subr.mxu0 0.0
    %205 = vmatpush2.xpose.msra.mxu0 0.0
    %206 = vmatprep.subr.mxu0 0.0
    %207 = vmatpush2.xpose.msra.mxu0 0.0
    %208 = vmatprep.subr.mxu0 0.0
    %209 = vmatpush2.xpose.msra.mxu0 0.0
    %210 = vmatprep.subr.mxu0 0.0
    %211 = vmatpush2.xpose.msra.mxu0 0.0
    %212 = vmatprep.subr.mxu0 0.0
    %213 = vmatpush2.xpose.msra.mxu0 0.0
    %214 = vmatprep.mubr.f32.mxu0 0.0
    %215 = vmatmul.mubr.f32.gmra.mxu0 %v145
    %v216 = vpop.f32.mrf.mxu0
    %v217 = vadd.f32 0.0, %v216
    %v218 = vpop.f32.mrf.mxu0
    %219 = vdwg.mxu0
    %vm220 = vcmask 64512
    %v221 = vsel %vm220, %v141, -inf
    %222 = vmax.xlane.f32.xlu0 %v221
    %v223 = vpop.xlane.xlu0 %222
    %v224 = vsel %vm220, %v217, -inf
    %225 = vmax.xlane.f32.xlu0 %v224
    %v226 = vpop.xlane.xlu0 %225
    %v227 = vsub.f32 %v141, %v223
    %v228 = vsub.f32 %v217, %v226
    %v229 = vmul.f32 %v227, 1.442695
    %v230 = vpow.pop %v229
    %v231 = vmul.f32 %v228, 1.442695
    %v232 = vpow.pop %v231
    %v233 = vsel %vm220, %v230, 0.0
    %234 = vadd.xlane.f32.xlu0 %v233
    %v235 = vpop.xlane.xlu0 %234
    %v236 = vsel %vm220, %v232, 0.0
    %237 = vadd.xlane.f32.xlu0 %v236
    %v238 = vpop.xlane.xlu0 %237
    %v239 = vrcp.pop %v235
    %v240 = vrcp.pop %v238
    %v241 = vmul.f32 %v235, %v239
    %v242 = vmul.f32 %v238, %v240
    %v243 = vsub.f32 2.0, %v241
    %v244 = vsub.f32 2.0, %v242
    %v245 = vmul.f32 %v239, %v243
    %v246 = vmul.f32 %v240, %v244
    %v247 = vmul.f32 %v230, %v245
    %v248 = vmul.f32 %v232, %v246
    %249 = vst.msk [vmem:[#allocation9] sm:$0xff] %vm220, %v247
    %250 = vst.msk [vmem:[#allocation9 + $0x8] sm:$0xff] %vm220, %v248
    %v252 = vsel %vm220, %v247, 0
    %254 = vmatprep.subr.mxu0 0.0
    %255 = vmatpush1.msra.mxu0 0.0
    %256 = vmatprep.subr.mxu0 0.0
    %257 = vmatpush1.msra.mxu0 0.0
    %258 = vmatprep.subr.mxu0 0.0
    %259 = vmatpush1.msra.mxu0 0.0
    %260 = vmatprep.subr.mxu0 0.0
    %261 = vmatpush1.msra.mxu0 0.0
    %262 = vmatprep.subr.mxu0 0.0
    %263 = vmatpush1.msra.mxu0 0.0
    %264 = vmatprep.subr.mxu0 0.0
    %265 = vmatpush1.msra.mxu0 0.0
    %266 = vmatprep.subr.mxu0 0.0
    %267 = vmatpush1.msra.mxu0 0.0
    %268 = vmatprep.subr.mxu0 0.0
    %269 = vmatpush1.msra.mxu0 0.0
    %270 = vmatprep.subr.mxu0 0.0
    %271 = vmatpush1.msra.mxu0 0.0
    %272 = vmatprep.subr.mxu0 0.0
    %273 = vmatpush1.msra.mxu0 0.0
    %274 = vmatprep.subr.mxu0 0.0
    %275 = vmatpush1.msra.mxu0 0.0
    %276 = vmatprep.subr.mxu0 0.0
    %277 = vmatpush1.msra.mxu0 0.0
    %278 = vmatprep.subr.mxu0 0.0
    %279 = vmatpush1.msra.mxu0 0.0
    %280 = vmatprep.subr.mxu0 0.0
    %281 = vmatpush1.msra.mxu0 0.0
    %282 = vmatprep.subr.mxu0 0.0
    %283 = vmatpush1.msra.mxu0 0.0
    %284 = vmatprep.subr.mxu0 0.0
    %285 = vmatpush1.msra.mxu0 %v65
    %286 = vmatprep.subr.mxu0 0.0
    %287 = vmatpush2.msra.mxu0 0.0
    %288 = vmatprep.subr.mxu0 0.0
    %289 = vmatpush2.msra.mxu0 0.0
    %290 = vmatprep.subr.mxu0 0.0
    %291 = vmatpush2.msra.mxu0 0.0
    %292 = vmatprep.subr.mxu0 0.0
    %293 = vmatpush2.msra.mxu0 0.0
    %294 = vmatprep.subr.mxu0 0.0
    %295 = vmatpush2.msra.mxu0 0.0
    %296 = vmatprep.subr.mxu0 0.0
    %297 = vmatpush2.msra.mxu0 0.0
    %298 = vmatprep.subr.mxu0 0.0
    %299 = vmatpush2.msra.mxu0 0.0
    %300 = vmatprep.subr.mxu0 0.0
    %301 = vmatpush2.msra.mxu0 0.0
    %302 = vmatprep.subr.mxu0 0.0
    %303 = vmatpush2.msra.mxu0 0.0
    %304 = vmatprep.subr.mxu0 0.0
    %305 = vmatpush2.msra.mxu0 0.0
    %306 = vmatprep.subr.mxu0 0.0
    %307 = vmatpush2.msra.mxu0 0.0
    %308 = vmatprep.subr.mxu0 0.0
    %309 = vmatpush2.msra.mxu0 0.0
    %310 = vmatprep.subr.mxu0 0.0
    %311 = vmatpush2.msra.mxu0 0.0
    %312 = vmatprep.subr.mxu0 0.0
    %313 = vmatpush2.msra.mxu0 0.0
    %314 = vmatprep.subr.mxu0 0.0
    %315 = vmatpush2.msra.mxu0 0.0
    %316 = vmatprep.subr.mxu0 0.0
    %317 = vmatpush2.msra.mxu0 0.0
    %318 = vmatprep.mubr.f32.mxu0 0.0
    %319 = vmatmul.mubr.f32.gmra.mxu0 %v252
    %v320 = vpop.f32.mrf.mxu0
    %v321 = vadd.f32 0.0, %v320
    %v322 = vpop.f32.mrf.mxu0
    %323 = vdwg.mxu0
    %v325 = vsel %vm220, %v248, 0
    %327 = vmatprep.subr.mxu0 0.0
    %328 = vmatpush1.msra.mxu0 0.0
    %329 = vmatprep.subr.mxu0 0.0
    %330 = vmatpush1.msra.mxu0 0.0
    %331 = vmatprep.subr.mxu0 0.0
    %332 = vmatpush1.msra.mxu0 0.0
    %333 = vmatprep.subr.mxu0 0.0
    %334 = vmatpush1.msra.mxu0 0.0
    %335 = vmatprep.subr.mxu0 0.0
    %336 = vmatpush1.msra.mxu0 0.0
    %337 = vmatprep.subr.mxu0 0.0
    %338 = vmatpush1.msra.mxu0 0.0
    %339 = vmatprep.subr.mxu0 0.0
    %340 = vmatpush1.msra.mxu0 0.0
    %341 = vmatprep.subr.mxu0 0.0
    %342 = vmatpush1.msra.mxu0 0.0
    %343 = vmatprep.subr.mxu0 0.0
    %344 = vmatpush1.msra.mxu0 0.0
    %345 = vmatprep.subr.mxu0 0.0
    %346 = vmatpush1.msra.mxu0 0.0
    %347 = vmatprep.subr.mxu0 0.0
    %348 = vmatpush1.msra.mxu0 0.0
    %349 = vmatprep.subr.mxu0 0.0
    %350 = vmatpush1.msra.mxu0 0.0
    %351 = vmatprep.subr.mxu0 0.0
    %352 = vmatpush1.msra.mxu0 0.0
    %353 = vmatprep.subr.mxu0 0.0
    %354 = vmatpush1.msra.mxu0 0.0
    %355 = vmatprep.subr.mxu0 0.0
    %356 = vmatpush1.msra.mxu0 0.0
    %357 = vmatprep.subr.mxu0 0.0
    %358 = vmatpush1.msra.mxu0 %v66
    %359 = vmatprep.subr.mxu0 0.0
    %360 = vmatpush2.msra.mxu0 0.0
    %361 = vmatprep.subr.mxu0 0.0
    %362 = vmatpush2.msra.mxu0 0.0
    %363 = vmatprep.subr.mxu0 0.0
    %364 = vmatpush2.msra.mxu0 0.0
    %365 = vmatprep.subr.mxu0 0.0
    %366 = vmatpush2.msra.mxu0 0.0
    %367 = vmatprep.subr.mxu0 0.0
    %368 = vmatpush2.msra.mxu0 0.0
    %369 = vmatprep.subr.mxu0 0.0
    %370 = vmatpush2.msra.mxu0 0.0
    %371 = vmatprep.subr.mxu0 0.0
    %372 = vmatpush2.msra.mxu0 0.0
    %373 = vmatprep.subr.mxu0 0.0
    %374 = vmatpush2.msra.mxu0 0.0
    %375 = vmatprep.subr.mxu0 0.0
    %376 = vmatpush2.msra.mxu0 0.0
    %377 = vmatprep.subr.mxu0 0.0
    %378 = vmatpush2.msra.mxu0 0.0
    %379 = vmatprep.subr.mxu0 0.0
    %380 = vmatpush2.msra.mxu0 0.0
    %381 = vmatprep.subr.mxu0 0.0
    %382 = vmatpush2.msra.mxu0 0.0
    %383 = vmatprep.subr.mxu0 0.0
    %384 = vmatpush2.msra.mxu0 0.0
    %385 = vmatprep.subr.mxu0 0.0
    %386 = vmatpush2.msra.mxu0 0.0
    %387 = vmatprep.subr.mxu0 0.0
    %388 = vmatpush2.msra.mxu0 0.0
    %389 = vmatprep.subr.mxu0 0.0
    %390 = vmatpush2.msra.mxu0 0.0
    %391 = vmatprep.mubr.f32.mxu0 0.0
    %392 = vmatmul.mubr.f32.gmra.mxu0 %v325
    %v393 = vpop.f32.mrf.mxu0
    %v394 = vadd.f32 0.0, %v393
    %v395 = vpop.f32.mrf.mxu0
    %396 = vdwg.mxu0
    %397 = vst.msk [vmem:[#allocation8] sm:$0xff] %vm67, %v321
    %398 = vst.msk [vmem:[#allocation8 + $0x8] sm:$0xff] %vm67, %v394
    // Predicated region
    $region26: #{tpu_custom_call.1} parent=1 // pred_check
      _
    $region27: #{tpu_custom_call.1} parent=1 // pred_check_branch
      %400 = sbr.rel (0) target = $region29
    $region28: #{tpu_custom_call.1} parent=1 // pred_region
      %s402 = ssub.s32 256, 256
      %403 = vsyncadd [#allocation4], %s402
      %s404 = sshll.u32 [#allocation8], 4
      %s405 = int_to_ptr.vmem [resolvable:$true] %s404
      %410 = dma.vmem_to_hbm [thread:$0]  %s405, 256, %s3, [#allocation4], 128, 128, 8
    $region29: #{tpu_custom_call.1} parent=1 // pred_fallthru
      _
    // Predicated region
    $region30: #{tpu_custom_call.1} parent=1 // pred_check
      _
    $region31: #{tpu_custom_call.1} parent=1 // pred_check_branch
      %412 = sbr.rel (0) target = $region33
    $region32: #{tpu_custom_call.1} parent=1 // pred_region
      %s414 = ssub.s32 256, 256
      %415 = vsyncadd [#allocation10], %s414
      %s416 = sshll.u32 [#allocation9], 4
      %s417 = int_to_ptr.vmem [resolvable:$true] %s416
      %422 = dma.vmem_to_hbm [thread:$0]  %s417, 256, %s4, [#allocation10], 128, 128, 8
    $region33: #{tpu_custom_call.1} parent=1 // pred_fallthru
      _
    // Predicated region
    $region34: #{tpu_custom_call.1} parent=1 // pred_check
      _
    $region35: #{tpu_custom_call.1} parent=1 // pred_check_branch
      %424 = sbr.rel (0) target = $region37
    $region36: #{tpu_custom_call.1} parent=1 // pred_region
      %425 = dma.done [#allocation4], 256
    $region37: #{tpu_custom_call.1} parent=1 // pred_fallthru
      _
    // Predicated region
    $region38: #{tpu_custom_call.1} parent=1 // pred_check
      _
    $region39: #{tpu_custom_call.1} parent=1 // pred_check_branch
      %427 = sbr.rel (0) target = $region41
    $region40: #{tpu_custom_call.1} parent=1 // pred_region
      %428 = dma.done [#allocation10], 256
    $region41: #{tpu_custom_call.1} parent=1 // pred_fallthru
      _
    %429 = vsyncpa [#allocation3], 1
    %430 = vsyncpa [#allocation6], 1
    %431 = vsyncpa [#allocation4], 1
    %432 = vsyncpa [#allocation10], 1

</llo_original>
